<compile_context>
chip_gen: v7x
topology: tpu7x:2x2x1
jax: 0.10.0
libtpu: 0.0.40
codegen_flags: <defaults>
</compile_context>

<pallas_src>
import jax
import jax.numpy as jnp
from jax.experimental import pallas as pl
from jax.experimental.pallas import tpu as pltpu


def _cdiv(a, b):
    return -(-a // b)


def _round_up(a, m):
    return _cdiv(a, m) * m


def _lin_kernel(x_ref, w_ref, bias_ref, o_ref):
    # x_ref:    (NB, C_in, TS)   NB images x one spatial tile (NCHW slab)
    # w_ref:    (C_out_p, C_in)  1x1-conv weight with BN scale folded in
    # bias_ref: (C_out_p, 1)     folded conv-bias + BN shift (f32)
    # o_ref:    (NB, C_out_p, TS)
    nb, c_in, _ = x_ref.shape
    w = w_ref[...]
    b = bias_ref[...]                       # f32, broadcast over lanes
    use_vpu_mac = c_in <= 8                 # tiny-K: skip the MXU entirely
    if use_vpu_mac:
        w32 = w.astype(jnp.float32)
    for i in range(nb):                     # NB is small & static -> unrolled
        xi = x_ref[i]                       # (C_in, TS)
        if use_vpu_mac:
            x32 = xi.astype(jnp.float32)
            y = w32[:, 0:1] * x32[0:1, :]   # (C_out_p,1)*(1,TS) -> (C_out_p,TS)
            for c in range(1, c_in):
                y = y + w32[:, c:c + 1] * x32[c:c + 1, :]
        else:
            y = jnp.dot(w, xi, preferred_element_type=jnp.float32)
        y = y + b
        o_ref[i] = jnp.maximum(y, 0.0).astype(o_ref.dtype)


def lin_forward(x_nchw, conv_w, conv_b, bn_gamma, bn_beta, bn_mean, bn_var,
                eps=1e-5, compute_dtype=jnp.float32, out_dtype=None,
                max_tile_s=None):
    """Fused 1x1 Conv2d + BatchNorm2d(eval) + ReLU on NCHW input.

    x_nchw : (N, C_in, H, W)
    conv_w : (C_out, C_in, 1, 1);  conv_b, bn_* : (C_out,)
    returns (N, C_out, H, W) in `out_dtype` (defaults to compute_dtype)
    """
    N, C_in, H, W = x_nchw.shape
    C_out = conv_w.shape[0]
    HW = H * W
    if out_dtype is None:
        out_dtype = compute_dtype

    # ---- fold BN into weight & bias (exact), pad C_out to the sublane pack --
    inv_std = 1.0 / jnp.sqrt(bn_var.astype(jnp.float32) + eps)
    scale = bn_gamma.astype(jnp.float32) * inv_std                    # (C_out,)
    w_folded = conv_w.reshape(C_out, C_in).astype(jnp.float32) * scale[:, None]
    bias = (bn_beta.astype(jnp.float32)
            + scale * (conv_b.astype(jnp.float32) - bn_mean.astype(jnp.float32)))

    in_bytes = jnp.dtype(compute_dtype).itemsize
    out_bytes = jnp.dtype(out_dtype).itemsize
    sub_pack = 16 if in_bytes == 2 else 8
    C_out_p = _round_up(C_out, sub_pack)
    if C_out_p != C_out:
        w_folded = jnp.pad(w_folded, ((0, C_out_p - C_out), (0, 0)))
        bias = jnp.pad(bias, (0, C_out_p - C_out))
    w_folded = w_folded.astype(compute_dtype)
    bias = bias.reshape(C_out_p, 1).astype(jnp.float32)   # epilogue stays f32

    # NCHW -> (N, C_in, H*W): pure reshape, no transpose.  (In a real network
    # the producer would already emit compute_dtype, making the cast a no-op.)
    x3 = x_nchw.reshape(N, C_in, HW).astype(compute_dtype)

    # ---- generation-aware VMEM budgets ------------------------------------
    try:
        vmem_cap = int(pltpu.get_tpu_info().vmem_capacity_bytes)
    except Exception:
        vmem_cap = 64 * 1024 * 1024
    if vmem_cap >= 96 * 1024 * 1024:          # v5e / v6e (128 MiB physical)
        tile_budget = 24 * 1024 * 1024
        vmem_limit = 64 * 1024 * 1024
        default_max_tile_s = 4096
    else:                                      # v7x (64 MiB) or unknown
        tile_budget = 8 * 1024 * 1024
        vmem_limit = 32 * 1024 * 1024
        default_max_tile_s = 2048
    if max_tile_s is None:
        max_tile_s = default_max_tile_s

    # Resident (double-buffered) weight + bias comes out of the tile budget.
    weight_foot = 2 * (in_bytes * C_out_p * C_in + 4 * C_out_p)
    sp_budget = max(tile_budget - weight_foot, 1 << 20)

    # Spatial tile: multiple of 128 (ragged tail masked by Pallas); full
    # extent only when HW itself is below one lane row.
    per_col = 2 * (in_bytes * C_in + out_bytes * C_out_p)   # dbl-buffered in+out
    if HW <= 128:
        tile_s = HW
    else:
        cap_cols = max(128, (sp_budget // per_col) // 128 * 128)
        tile_s = min(max_tile_s, cap_cols, _round_up(HW, 128))
    num_sp = _cdiv(HW, tile_s)

    # Small feature maps: batch NB images per grid step (whole image fits in
    # one spatial tile) so per-step overhead is amortized.
    if num_sp == 1 and N > 1:
        per_img = per_col * tile_s
        NB = int(min(N, 8, max(1, sp_budget // max(per_img, 1))))
        while N % NB:          # exact batch blocks -> no ragged leading dim
            NB -= 1
    else:
        NB = 1
    n_blocks = _cdiv(N, NB)

    # v7x has 2 TensorCores: keep the parallel-grid product even when it is
    # cheap to do so (harmless on single-core chips).
    if num_sp > 1 and (n_blocks * num_sp) % 2 == 1:
        ts = max(128, _round_up(_cdiv(HW, num_sp + 1), 128))
        if _cdiv(HW, ts) % 2 == 0:
            tile_s, num_sp = ts, _cdiv(HW, ts)

    grid = (n_blocks, num_sp)

    flops = int(2 * N * C_out_p * C_in * HW)
    bytes_accessed = int(in_bytes * N * C_in * HW
                         + out_bytes * N * C_out_p * HW
                         + in_bytes * C_out_p * C_in + 4 * C_out_p)

    out3 = pl.pallas_call(
        _lin_kernel,
        out_shape=jax.ShapeDtypeStruct((N, C_out_p, HW), out_dtype),
        grid_spec=pltpu.PrefetchScalarGridSpec(
            num_scalar_prefetch=0,
            grid=grid,
            in_specs=[
                pl.BlockSpec((NB, C_in, tile_s), lambda n, s: (n, 0, s)),
                pl.BlockSpec((C_out_p, C_in), lambda n, s: (0, 0)),
                pl.BlockSpec((C_out_p, 1), lambda n, s: (0, 0)),
            ],
            out_specs=pl.BlockSpec((NB, C_out_p, tile_s), lambda n, s: (n, 0, s)),
        ),
        compiler_params=pltpu.CompilerParams(
            dimension_semantics=("parallel", "parallel"),
            vmem_limit_bytes=vmem_limit,
        ),
        cost_estimate=pl.CostEstimate(flops=flops, transcendentals=0,
                                      bytes_accessed=bytes_accessed),
    )(x3, w_folded, bias)

    out = out3.reshape(N, C_out_p, H, W)
    if C_out_p != C_out:
        out = out[:, :C_out]
    return out


def lin_reference(x_nchw, conv_w, conv_b, bn_gamma, bn_beta, bn_mean, bn_var,
                  eps=1e-5):
    """Plain-JAX reference (eval-mode BN), full-precision matmul."""
    C_out, C_in = conv_w.shape[0], conv_w.shape[1]
    w_mat = conv_w.reshape(C_out, C_in)
    y = jnp.einsum("nchw,oc->nohw", x_nchw, w_mat,
                   precision=jax.lax.Precision.HIGHEST)
    y = y + conv_b[None, :, None, None]
    inv_std = 1.0 / jnp.sqrt(bn_var + eps)
    y = (y - bn_mean[None, :, None, None]) * (bn_gamma * inv_std)[None, :, None, None] \
        + bn_beta[None, :, None, None]
    return jnp.maximum(y, 0.0)


if __name__ == "__main__":
    key = jax.random.PRNGKey(0)

    def make_params(k, c_in, c_out):
        k_w, k_b, k_g, k_be, k_m, k_v = jax.random.split(k, 6)
        bound = 1.0 / (c_in ** 0.5)
        conv_w = jax.random.uniform(k_w, (c_out, c_in, 1, 1),
                                    minval=-bound, maxval=bound, dtype=jnp.float32)
        conv_b = jax.random.uniform(k_b, (c_out,),
                                    minval=-bound, maxval=bound, dtype=jnp.float32)
        bn_gamma = jax.random.uniform(k_g, (c_out,), minval=0.5, maxval=1.5,
                                      dtype=jnp.float32)
        bn_beta = jax.random.uniform(k_be, (c_out,), minval=-0.5, maxval=0.5,
                                     dtype=jnp.float32)
        bn_mean = jax.random.uniform(k_m, (c_out,), minval=-0.5, maxval=0.5,
                                     dtype=jnp.float32)
        bn_var = jax.random.uniform(k_v, (c_out,), minval=0.5, maxval=1.5,
                                    dtype=jnp.float32)
        return conv_w, conv_b, bn_gamma, bn_beta, bn_mean, bn_var

    k1, k2, k3, k4 = jax.random.split(key, 4)

    # (1) spec shapes, f32 path (exact parity; small-map NB batching + VPU MAC)
    N, C_in, C_out, H, W = 2, 4, 8, 16, 16
    x = jax.random.normal(k1, (N, C_in, H, W), dtype=jnp.float32)
    params = make_params(k2, C_in, C_out)
    out = jax.block_until_ready(lin_forward(x, *params))
    ref = lin_reference(x, *params)
    assert out.shape == (N, C_out, H, W)
    assert jnp.allclose(out, ref, atol=1e-4, rtol=1e-4)

    # (2) same shapes, bf16 data path (memory-roofline config; padded C_out)
    out_bf16 = jax.block_until_ready(
        lin_forward(x, *params, compute_dtype=jnp.bfloat16))
    assert out_bf16.shape == (N, C_out, H, W)
    assert jnp.allclose(out_bf16.astype(jnp.float32), ref, atol=5e-2, rtol=5e-2)

    # (3) ragged spatial extent (HW not a 128-multiple) + MXU dot path (C_in>8)
    N2, C_in2, C_out2, H2, W2 = 3, 16, 32, 13, 13
    x2 = jax.random.normal(k3, (N2, C_in2, H2, W2), dtype=jnp.float32)
    params2 = make_params(k4, C_in2, C_out2)
    out2 = jax.block_until_ready(lin_forward(x2, *params2))
    ref2 = lin_reference(x2, *params2)
    assert out2.shape == (N2, C_out2, H2, W2)
    assert jnp.allclose(out2, ref2, atol=5e-2, rtol=5e-2)

    print("KERNEL_OK")
</pallas_src>

<mosaic_0001>
module attributes {stable_mosaic.version = 11 : i64} {
  func.func @_lin_kernel(%arg0: i32, %arg1: i32, %arg2: memref<2x4x256xf32, #tpu.memory_space<vmem>>, %arg3: memref<8x4xf32, #tpu.memory_space<vmem>>, %arg4: memref<8x1xf32, #tpu.memory_space<vmem>>, %arg5: memref<2x8x256xf32, #tpu.memory_space<vmem>>) attributes {dimension_semantics = [#tpu.dimension_semantics<parallel>, #tpu.dimension_semantics<parallel>], iteration_bounds = array<i64: 1, 1>, scalar_prefetch = 0 : i64, scratch_operands = 0 : i64, tpu.core_type = #tpu.core_type<tc>, window_params = [{transform_indices = @transform_0, window_bounds = array<i64: 2, 4, 256>}, {pipeline_mode = #tpu.pipeline_mode<synchronous>, transform_indices = @transform_1, window_bounds = array<i64: 8, 4>}, {pipeline_mode = #tpu.pipeline_mode<synchronous>, transform_indices = @transform_2, window_bounds = array<i64: 8, 1>}, {transform_indices = @transform_3, window_bounds = array<i64: 2, 8, 256>}]} {
    %c0 = arith.constant 0 : index
    %c0_0 = arith.constant 0 : index
    %0 = vector.load %arg3[%c0, %c0_0] : memref<8x4xf32, #tpu.memory_space<vmem>>, vector<8x4xf32>
    %c0_1 = arith.constant 0 : index
    %c0_2 = arith.constant 0 : index
    %1 = vector.load %arg4[%c0_1, %c0_2] : memref<8x1xf32, #tpu.memory_space<vmem>>, vector<8x1xf32>
    %c0_3 = arith.constant 0 : index
    %c0_4 = arith.constant 0 : index
    %c0_5 = arith.constant 0 : index
    %2 = vector.load %arg2[%c0_3, %c0_4, %c0_5] : memref<2x4x256xf32, #tpu.memory_space<vmem>>, vector<1x4x256xf32>
    %3 = vector.shape_cast %2 : vector<1x4x256xf32> to vector<4x256xf32>
    %4 = vector.extract_strided_slice %0 {offsets = [0, 0], sizes = [8, 1], strides = [1, 1]} : vector<8x4xf32> to vector<8x1xf32>
    %5 = vector.extract_strided_slice %3 {offsets = [0, 0], sizes = [1, 256], strides = [1, 1]} : vector<4x256xf32> to vector<1x256xf32>
    %6 = vector.broadcast %4 : vector<8x1xf32> to vector<8x256xf32>
    %7 = vector.broadcast %5 : vector<1x256xf32> to vector<8x256xf32>
    %8 = arith.mulf %6, %7 : vector<8x256xf32>
    %9 = vector.extract_strided_slice %0 {offsets = [0, 1], sizes = [8, 1], strides = [1, 1]} : vector<8x4xf32> to vector<8x1xf32>
    %10 = vector.extract_strided_slice %3 {offsets = [1, 0], sizes = [1, 256], strides = [1, 1]} : vector<4x256xf32> to vector<1x256xf32>
    %11 = vector.broadcast %9 : vector<8x1xf32> to vector<8x256xf32>
    %12 = vector.broadcast %10 : vector<1x256xf32> to vector<8x256xf32>
    %13 = arith.mulf %11, %12 : vector<8x256xf32>
    %14 = arith.addf %8, %13 : vector<8x256xf32>
    %15 = vector.extract_strided_slice %0 {offsets = [0, 2], sizes = [8, 1], strides = [1, 1]} : vector<8x4xf32> to vector<8x1xf32>
    %16 = vector.extract_strided_slice %3 {offsets = [2, 0], sizes = [1, 256], strides = [1, 1]} : vector<4x256xf32> to vector<1x256xf32>
    %17 = vector.broadcast %15 : vector<8x1xf32> to vector<8x256xf32>
    %18 = vector.broadcast %16 : vector<1x256xf32> to vector<8x256xf32>
    %19 = arith.mulf %17, %18 : vector<8x256xf32>
    %20 = arith.addf %14, %19 : vector<8x256xf32>
    %21 = vector.extract_strided_slice %0 {offsets = [0, 3], sizes = [8, 1], strides = [1, 1]} : vector<8x4xf32> to vector<8x1xf32>
    %22 = vector.extract_strided_slice %3 {offsets = [3, 0], sizes = [1, 256], strides = [1, 1]} : vector<4x256xf32> to vector<1x256xf32>
    %23 = vector.broadcast %21 : vector<8x1xf32> to vector<8x256xf32>
    %24 = vector.broadcast %22 : vector<1x256xf32> to vector<8x256xf32>
    %25 = arith.mulf %23, %24 : vector<8x256xf32>
    %26 = arith.addf %20, %25 : vector<8x256xf32>
    %27 = vector.broadcast %1 : vector<8x1xf32> to vector<8x256xf32>
    %28 = arith.addf %26, %27 : vector<8x256xf32>
    %cst = arith.constant 0.000000e+00 : f32
    %29 = vector.broadcast %cst : f32 to vector<8x256xf32>
    %30 = arith.maximumf %28, %29 : vector<8x256xf32>
    %c0_6 = arith.constant 0 : index
    %c0_7 = arith.constant 0 : index
    %c0_8 = arith.constant 0 : index
    %31 = vector.load %arg5[%c0_6, %c0_7, %c0_8] : memref<2x8x256xf32, #tpu.memory_space<vmem>>, vector<1x8x256xf32>
    %32 = vector.shape_cast %31 : vector<1x8x256xf32> to vector<8x256xf32>
    %33 = vector.shape_cast %30 : vector<8x256xf32> to vector<1x8x256xf32>
    tpu.vector_store %arg5[%c0_6, %c0_7, %c0_8], %33 {strides = array<i32>} : memref<2x8x256xf32, #tpu.memory_space<vmem>>, vector<1x8x256xf32>,
    %c1 = arith.constant 1 : index
    %c0_9 = arith.constant 0 : index
    %c0_10 = arith.constant 0 : index
    %34 = vector.load %arg2[%c1, %c0_9, %c0_10] : memref<2x4x256xf32, #tpu.memory_space<vmem>>, vector<1x4x256xf32>
    %35 = vector.shape_cast %34 : vector<1x4x256xf32> to vector<4x256xf32>
    %36 = vector.extract_strided_slice %0 {offsets = [0, 0], sizes = [8, 1], strides = [1, 1]} : vector<8x4xf32> to vector<8x1xf32>
    %37 = vector.extract_strided_slice %35 {offsets = [0, 0], sizes = [1, 256], strides = [1, 1]} : vector<4x256xf32> to vector<1x256xf32>
    %38 = vector.broadcast %36 : vector<8x1xf32> to vector<8x256xf32>
    %39 = vector.broadcast %37 : vector<1x256xf32> to vector<8x256xf32>
    %40 = arith.mulf %38, %39 : vector<8x256xf32>
    %41 = vector.extract_strided_slice %0 {offsets = [0, 1], sizes = [8, 1], strides = [1, 1]} : vector<8x4xf32> to vector<8x1xf32>
    %42 = vector.extract_strided_slice %35 {offsets = [1, 0], sizes = [1, 256], strides = [1, 1]} : vector<4x256xf32> to vector<1x256xf32>
    %43 = vector.broadcast %41 : vector<8x1xf32> to vector<8x256xf32>
    %44 = vector.broadcast %42 : vector<1x256xf32> to vector<8x256xf32>
    %45 = arith.mulf %43, %44 : vector<8x256xf32>
    %46 = arith.addf %40, %45 : vector<8x256xf32>
    %47 = vector.extract_strided_slice %0 {offsets = [0, 2], sizes = [8, 1], strides = [1, 1]} : vector<8x4xf32> to vector<8x1xf32>
    %48 = vector.extract_strided_slice %35 {offsets = [2, 0], sizes = [1, 256], strides = [1, 1]} : vector<4x256xf32> to vector<1x256xf32>
    %49 = vector.broadcast %47 : vector<8x1xf32> to vector<8x256xf32>
    %50 = vector.broadcast %48 : vector<1x256xf32> to vector<8x256xf32>
    %51 = arith.mulf %49, %50 : vector<8x256xf32>
    %52 = arith.addf %46, %51 : vector<8x256xf32>
    %53 = vector.extract_strided_slice %0 {offsets = [0, 3], sizes = [8, 1], strides = [1, 1]} : vector<8x4xf32> to vector<8x1xf32>
    %54 = vector.extract_strided_slice %35 {offsets = [3, 0], sizes = [1, 256], strides = [1, 1]} : vector<4x256xf32> to vector<1x256xf32>
    %55 = vector.broadcast %53 : vector<8x1xf32> to vector<8x256xf32>
    %56 = vector.broadcast %54 : vector<1x256xf32> to vector<8x256xf32>
    %57 = arith.mulf %55, %56 : vector<8x256xf32>
    %58 = arith.addf %52, %57 : vector<8x256xf32>
    %59 = vector.broadcast %1 : vector<8x1xf32> to vector<8x256xf32>
    %60 = arith.addf %58, %59 : vector<8x256xf32>
    %cst_11 = arith.constant 0.000000e+00 : f32
    %61 = vector.broadcast %cst_11 : f32 to vector<8x256xf32>
    %62 = arith.maximumf %60, %61 : vector<8x256xf32>
    %c1_12 = arith.constant 1 : index
    %c0_13 = arith.constant 0 : index
    %c0_14 = arith.constant 0 : index
    %63 = vector.load %arg5[%c1_12, %c0_13, %c0_14] : memref<2x8x256xf32, #tpu.memory_space<vmem>>, vector<1x8x256xf32>
    %64 = vector.shape_cast %63 : vector<1x8x256xf32> to vector<8x256xf32>
    %65 = vector.shape_cast %62 : vector<8x256xf32> to vector<1x8x256xf32>
    tpu.vector_store %arg5[%c1_12, %c0_13, %c0_14], %65 {strides = array<i32>} : memref<2x8x256xf32, #tpu.memory_space<vmem>>, vector<1x8x256xf32>,
    return
  }
  func.func @transform_0(%arg0: i32, %arg1: i32) -> (i32, i32, i32) {
    %c0_i32 = arith.constant 0 : i32
    %c0_i32_0 = arith.constant 0 : i32
    return %arg0, %c0_i32, %arg1 : i32, i32, i32
  }
  func.func @transform_1(%arg0: i32, %arg1: i32) -> (i32, i32) {
    %c0_i32 = arith.constant 0 : i32
    %c0_i32_0 = arith.constant 0 : i32
    %c0_i32_1 = arith.constant 0 : i32
    return %c0_i32, %c0_i32_0 : i32, i32
  }
  func.func @transform_2(%arg0: i32, %arg1: i32) -> (i32, i32) {
    %c0_i32 = arith.constant 0 : i32
    %c0_i32_0 = arith.constant 0 : i32
    %c0_i32_1 = arith.constant 0 : i32
    return %c0_i32, %c0_i32_0 : i32, i32
  }
  func.func @transform_3(%arg0: i32, %arg1: i32) -> (i32, i32, i32) {
    %c0_i32 = arith.constant 0 : i32
    %c0_i32_0 = arith.constant 0 : i32
    return %arg0, %c0_i32, %arg1 : i32, i32, i32
  }
}

</mosaic_0001>

<llo_original>
// kernel: tpu_custom_call.1
$region0: #{tpu_custom_call.1}
  #allocation0 [shape = 'u32[]', space=smem, size = 0x4, offset = 0x4, fixed_abs, tag = 'smem constant byte address 0x4 - core index']
  #allocation1 [shape = 'u32[144,128]{1,0:T(1,128)}', space=vmem, size = 0x12000, scoped, tag = 'internal scratch']
  %s0 = inlined_call_operand.vmem [shape: f32[2,4,256], index: 0, kind: input, shape index: {}]
  %s1 = inlined_call_operand.vmem [shape: f32[8,4], index: 1, kind: input, shape index: {}]
  %s2 = inlined_call_operand.vmem [shape: f32[8,1], index: 2, kind: input, shape index: {}]
  %s3 = inlined_call_operand.hbm [shape: f32[2,8,256], index: 3, kind: output, shape index: {}]
  %s4 = sld [smem:[#allocation0]]
  $region22: #{tpu_custom_call.1} parent=0
    _
  %s6 = ssub.s32 1, %s4
  %s7 = scalar_select 0, %s6, %s4
  $region1: #{tpu_custom_call.1} parent=0
    #allocation2 [shape = 'u8[16384]{0}', space=vmem, size = 0x4000, scoped, tag = 'output window, operand 0, single buffered']
    #allocation3 [shape = 's32[1]{0}', space=sflag, size = 0x4, scoped, tag = 'scoped memory for tpu_custom_call.1']
    %8 = vsyncpa [#allocation3], 0
    // Predicated region
    $region2: #{tpu_custom_call.1} parent=1 // pred_check
      _
    $region3: #{tpu_custom_call.1} parent=1 // pred_check_branch
      %10 = sbr.rel (0) target = $region5
    $region4: #{tpu_custom_call.1} parent=1 // pred_region
      _
    $region5: #{tpu_custom_call.1} parent=1 // pred_fallthru
      _
    // Predicated region
    $region6: #{tpu_custom_call.1} parent=1 // pred_check
      _
    $region7: #{tpu_custom_call.1} parent=1 // pred_check_branch
      %12 = sbr.rel (0) target = $region9
    $region8: #{tpu_custom_call.1} parent=1 // pred_region
      _
    $region9: #{tpu_custom_call.1} parent=1 // pred_fallthru
      _
    // Predicated region
    $region10: #{tpu_custom_call.1} parent=1 // pred_check
      _
    $region11: #{tpu_custom_call.1} parent=1 // pred_check_branch
      %14 = sbr.rel (0) target = $region13
    $region12: #{tpu_custom_call.1} parent=1 // pred_region
      _
    $region13: #{tpu_custom_call.1} parent=1 // pred_fallthru
      _
    %v15 = vld [vmem:[%s1] sm:$0xff]
    %v16 = vld [vmem:[%s2] sm:$0xff]
    %v17 = vld [vmem:[%s0] sm:$0xff]
    %19 = vset.pattern.permute.xlu0 0
    %20 = vperm.xlu0 %19, %v15
    %v21 = vpop.permute.xlu0 %20
    %v24 = vlaneseq
    %v25 = vshrl.u32 %v24, 7
    %v26 = vsub.s32 0, %v25
    %v27 = vrot.slane %v17, %v26
    %v28 = vlaneseq
    %v29 = vshrl.u32 %v28, 7
    %v30 = vsub.s32 4, %v29
    %v31 = vrot.slane %v17, %v30
    %v34 = vlaneseq
    %v35 = vshrl.u32 %v34, 7
    %v36 = vsub.s32 0, %v35
    %v37 = vrot.slane %v27, %v36
    %v38 = vlaneseq
    %v39 = vshrl.u32 %v38, 7
    %v40 = vsub.s32 0, %v39
    %v41 = vrot.slane %v31, %v40
    %v42 = vmul.f32 %v21, %v37
    %v43 = vmul.f32 %v21, %v41
    %44 = vset.pattern.permute.xlu0 1
    %45 = vperm.xlu0 %44, %v15
    %v46 = vpop.permute.xlu0 %45
    %v48 = vlaneseq
    %v49 = vshrl.u32 %v48, 7
    %v50 = vsub.s32 1, %v49
    %v51 = vrot.slane %v17, %v50
    %v52 = vlaneseq
    %v53 = vshrl.u32 %v52, 7
    %v54 = vsub.s32 5, %v53
    %v55 = vrot.slane %v17, %v54
    %v58 = vlaneseq
    %v59 = vshrl.u32 %v58, 7
    %v60 = vsub.s32 1, %v59
    %v61 = vrot.slane %v51, %v60
    %v62 = vlaneseq
    %v63 = vshrl.u32 %v62, 7
    %v64 = vsub.s32 1, %v63
    %v65 = vrot.slane %v55, %v64
    %v66 = vmul.f32 %v46, %v61
    %v67 = vmul.f32 %v46, %v65
    %v68 = vadd.f32 %v42, %v66
    %v69 = vadd.f32 %v43, %v67
    %70 = vset.pattern.permute.xlu0 2
    %71 = vperm.xlu0 %70, %v15
    %v72 = vpop.permute.xlu0 %71
    %v74 = vlaneseq
    %v75 = vshrl.u32 %v74, 7
    %v76 = vsub.s32 2, %v75
    %v77 = vrot.slane %v17, %v76
    %v78 = vlaneseq
    %v79 = vshrl.u32 %v78, 7
    %v80 = vsub.s32 6, %v79
    %v81 = vrot.slane %v17, %v80
    %v84 = vlaneseq
    %v85 = vshrl.u32 %v84, 7
    %v86 = vsub.s32 2, %v85
    %v87 = vrot.slane %v77, %v86
    %v88 = vlaneseq
    %v89 = vshrl.u32 %v88, 7
    %v90 = vsub.s32 2, %v89
    %v91 = vrot.slane %v81, %v90
    %v92 = vmul.f32 %v72, %v87
    %v93 = vmul.f32 %v72, %v91
    %v94 = vadd.f32 %v68, %v92
    %v95 = vadd.f32 %v69, %v93
    %96 = vset.pattern.permute.xlu0 3
    %97 = vperm.xlu0 %96, %v15
    %v98 = vpop.permute.xlu0 %97
    %v100 = vlaneseq
    %v101 = vshrl.u32 %v100, 7
    %v102 = vsub.s32 3, %v101
    %v103 = vrot.slane %v17, %v102
    %v104 = vlaneseq
    %v105 = vshrl.u32 %v104, 7
    %v106 = vsub.s32 7, %v105
    %v107 = vrot.slane %v17, %v106
    %v110 = vlaneseq
    %v111 = vshrl.u32 %v110, 7
    %v112 = vsub.s32 3, %v111
    %v113 = vrot.slane %v103, %v112
    %v114 = vlaneseq
    %v115 = vshrl.u32 %v114, 7
    %v116 = vsub.s32 3, %v115
    %v117 = vrot.slane %v107, %v116
    %v118 = vmul.f32 %v98, %v113
    %v119 = vmul.f32 %v98, %v117
    %v120 = vadd.f32 %v94, %v118
    %v121 = vadd.f32 %v95, %v119
    %123 = vset.pattern.permute.xlu0 0
    %124 = vperm.xlu0 %123, %v16
    %v125 = vpop.permute.xlu0 %124
    %v127 = vadd.f32 %v120, %v125
    %v128 = vadd.f32 %v121, %v125
    %v129 = vmax.f32 %v127, 0.0
    %v130 = vmax.f32 %v128, 0.0
    %131 = vst [vmem:[#allocation2] sm:$0xff] %v129
    %132 = vst [vmem:[#allocation2 + $0x8] sm:$0xff] %v130
    %s133 = scalar_lea.vmem %s0, 8
    %v134 = vld [vmem:[%s133] sm:$0xff]
    %v136 = vlaneseq
    %v137 = vshrl.u32 %v136, 7
    %v138 = vsub.s32 0, %v137
    %v139 = vrot.slane %v134, %v138
    %v140 = vlaneseq
    %v141 = vshrl.u32 %v140, 7
    %v142 = vsub.s32 4, %v141
    %v143 = vrot.slane %v134, %v142
    %v146 = vlaneseq
    %v147 = vshrl.u32 %v146, 7
    %v148 = vsub.s32 0, %v147
    %v149 = vrot.slane %v139, %v148
    %v150 = vlaneseq
    %v151 = vshrl.u32 %v150, 7
    %v152 = vsub.s32 0, %v151
    %v153 = vrot.slane %v143, %v152
    %v154 = vmul.f32 %v21, %v149
    %v155 = vmul.f32 %v21, %v153
    %v156 = vlaneseq
    %v157 = vshrl.u32 %v156, 7
    %v158 = vsub.s32 1, %v157
    %v159 = vrot.slane %v134, %v158
    %v160 = vlaneseq
    %v161 = vshrl.u32 %v160, 7
    %v162 = vsub.s32 5, %v161
    %v163 = vrot.slane %v134, %v162
    %v166 = vlaneseq
    %v167 = vshrl.u32 %v166, 7
    %v168 = vsub.s32 1, %v167
    %v169 = vrot.slane %v159, %v168
    %v170 = vlaneseq
    %v171 = vshrl.u32 %v170, 7
    %v172 = vsub.s32 1, %v171
    %v173 = vrot.slane %v163, %v172
    %v174 = vmul.f32 %v46, %v169
    %v175 = vmul.f32 %v46, %v173
    %v176 = vadd.f32 %v154, %v174
    %v177 = vadd.f32 %v155, %v175
    %v178 = vlaneseq
    %v179 = vshrl.u32 %v178, 7
    %v180 = vsub.s32 2, %v179
    %v181 = vrot.slane %v134, %v180
    %v182 = vlaneseq
    %v183 = vshrl.u32 %v182, 7
    %v184 = vsub.s32 6, %v183
    %v185 = vrot.slane %v134, %v184
    %v188 = vlaneseq
    %v189 = vshrl.u32 %v188, 7
    %v190 = vsub.s32 2, %v189
    %v191 = vrot.slane %v181, %v190
    %v192 = vlaneseq
    %v193 = vshrl.u32 %v192, 7
    %v194 = vsub.s32 2, %v193
    %v195 = vrot.slane %v185, %v194
    %v196 = vmul.f32 %v72, %v191
    %v197 = vmul.f32 %v72, %v195
    %v198 = vadd.f32 %v176, %v196
    %v199 = vadd.f32 %v177, %v197
    %v200 = vlaneseq
    %v201 = vshrl.u32 %v200, 7
    %v202 = vsub.s32 3, %v201
    %v203 = vrot.slane %v134, %v202
    %v204 = vlaneseq
    %v205 = vshrl.u32 %v204, 7
    %v206 = vsub.s32 7, %v205
    %v207 = vrot.slane %v134, %v206
    %v210 = vlaneseq
    %v211 = vshrl.u32 %v210, 7
    %v212 = vsub.s32 3, %v211
    %v213 = vrot.slane %v203, %v212
    %v214 = vlaneseq
    %v215 = vshrl.u32 %v214, 7
    %v216 = vsub.s32 3, %v215
    %v217 = vrot.slane %v207, %v216
    %v218 = vmul.f32 %v98, %v213
    %v219 = vmul.f32 %v98, %v217
    %v220 = vadd.f32 %v198, %v218
    %v221 = vadd.f32 %v199, %v219
    %v222 = vadd.f32 %v220, %v125
    %v223 = vadd.f32 %v221, %v125
    %v224 = vmax.f32 %v222, 0.0
    %v225 = vmax.f32 %v223, 0.0
    %s226 = scalar_lea.vmem [#allocation2], 16
    %227 = vst [vmem:[%s226] sm:$0xff] %v224
    %228 = vst [vmem:[%s226 + $0x8] sm:$0xff] %v225
    // Predicated region
    $region14: #{tpu_custom_call.1} parent=1 // pred_check
      _
    $region15: #{tpu_custom_call.1} parent=1 // pred_check_branch
      %230 = sbr.rel (0) target = $region17
    $region16: #{tpu_custom_call.1} parent=1 // pred_region
      %s232 = ssub.s32 512, 512
      %233 = vsyncadd [#allocation3], %s232
      %s234 = sshll.u32 [#allocation2], 4
      %s235 = int_to_ptr.vmem [resolvable:$true] %s234
      %240 = dma.vmem_to_hbm [thread:$0]  %s235, 512, %s3, [#allocation3], 256, 256, 16
    $region17: #{tpu_custom_call.1} parent=1 // pred_fallthru
      _
    // Predicated region
    $region18: #{tpu_custom_call.1} parent=1 // pred_check
      _
    $region19: #{tpu_custom_call.1} parent=1 // pred_check_branch
      %242 = sbr.rel (0) target = $region21
    $region20: #{tpu_custom_call.1} parent=1 // pred_region
      %243 = dma.done [#allocation3], 512
    $region21: #{tpu_custom_call.1} parent=1 // pred_fallthru
      _
    %244 = vsyncpa [#allocation3], 1

</llo_original>
